<compile_context>
chip_gen: v7x
topology: tpu7x:2x2x1
jax: 0.10.0
libtpu: 0.0.40
codegen_flags: <defaults>
</compile_context>

<pallas_src>
import jax
import jax.numpy as jnp
from jax.experimental import pallas as pl
from jax.experimental.pallas import tpu as pltpu

LN_EPS = 1e-5   # PyTorch nn.LayerNorm default
LANE = 128


def _layernorm_relu(h, gamma, beta):
    # One-pass moments: mean(h) and mean(h*h) are independent cross-lane reductions,
    # so they overlap in the XLU FIFO (vs. the serialized mean((h-mu)^2) form).
    mu = jnp.mean(h, axis=-1, keepdims=True)
    ms = jnp.mean(h * h, axis=-1, keepdims=True)
    var = jnp.maximum(ms - mu * mu, 0.0)
    h = (h - mu) * jax.lax.rsqrt(var + LN_EPS)
    return jnp.maximum(h * gamma + beta, 0.0)


def actor_kernel(x_ref,
                 w1_ref, vec1_ref,
                 w2_ref, vec2_ref,
                 w3_ref, b3_ref,
                 o_ref):
    # x is already bf16 (cast in the wrapper).
    x = x_ref[...]

    # ---- Layer 1: Linear (bf16 MXU operands, f32 accumulate) + LayerNorm + ReLU ----
    h = jnp.dot(x, w1_ref[...], preferred_element_type=jnp.float32) + vec1_ref[0:1, :]
    h = _layernorm_relu(h, vec1_ref[1:2, :], vec1_ref[2:3, :])

    # ---- Layer 2: Linear + LayerNorm + ReLU ----
    h = jnp.dot(h.astype(jnp.bfloat16), w2_ref[...],
                preferred_element_type=jnp.float32) + vec2_ref[0:1, :]
    h = _layernorm_relu(h, vec2_ref[1:2, :], vec2_ref[2:3, :])

    # ---- Layer 3: Linear + Tanh (output padded to 128 lanes -> unmasked vst; bf16 store
    #      halves HBM writeback, the dominant stream at large B) ----
    out = jnp.dot(h.astype(jnp.bfloat16), w3_ref[...],
                  preferred_element_type=jnp.float32) + b3_ref[...]
    o_ref[...] = jnp.tanh(out).astype(o_ref.dtype)


def _default_batch_tile(B):
    """Only split the batch when every tile still has >= 256 rows (keeps the MXU fed and
    amortizes the ~0.35 us/step pipeline overhead). Prefer an even step count so the
    'parallel' batch axis shards evenly across v7x's two TensorCores. Small / odd B runs
    as a single full-batch block."""
    if B < 512:
        return B
    candidates = [tb for tb in (2048, 1024, 512, 256) if B % tb == 0 and B // tb >= 2]
    if not candidates:
        return B
    even = [tb for tb in candidates if (B // tb) % 2 == 0]
    return max(even) if even else max(candidates)


def actor_forward(state, params, *, batch_tile=None):
    """state: (B, state_size) float32. Returns (B, action_size) float32."""
    B, S = state.shape
    w1, vec1 = params["w1"], params["vec1"]
    w2, vec2 = params["w2"], params["vec2"]
    w3, b3 = params["w3"], params["b3"]
    A = params["action_size"]
    H1, H2, Ap = w1.shape[1], w2.shape[1], w3.shape[1]   # Ap = padded (lane-dense) action dim

    tb = _default_batch_tile(B) if batch_tile is None else batch_tile
    assert B % tb == 0 and (tb == B or tb % 8 == 0), (B, tb)

    # Cast state once in the wrapper: halves the state DMA and removes a per-tile VPU cast.
    state_bf16 = state.astype(jnp.bfloat16)

    # Advisory cost for XLA's scheduler around the custom call.
    matmul_elems = S * H1 + H1 * H2 + H2 * Ap
    cost = pl.CostEstimate(
        flops=2 * B * matmul_elems,
        transcendentals=B * (Ap + 2),                      # tanh + 2 rsqrt per row
        bytes_accessed=(2 * B * S                          # state (bf16)
                        + 2 * matmul_elems                 # weights (bf16)
                        + 4 * (3 * H1 + 3 * H2 + Ap)       # packed LN/bias vectors (f32)
                        + 2 * B * Ap),                     # padded output (bf16)
    )

    def rep(shape):
        # Replicated operand: constant block index across the grid -> fetched once.
        return pl.BlockSpec(shape, lambda i: (0, 0))

    grid_spec = pltpu.PrefetchScalarGridSpec(
        num_scalar_prefetch=0,
        grid=(B // tb,),
        in_specs=[
            pl.BlockSpec((tb, S), lambda i: (i, 0)),       # state tile
            rep((S, H1)), rep((3, H1)),                    # w1, [b1; g1; be1]
            rep((H1, H2)), rep((3, H2)),                   # w2, [b2; g2; be2]
            rep((H2, Ap)), rep((1, Ap)),                   # w3, b3
        ],
        out_specs=pl.BlockSpec((tb, Ap), lambda i: (i, 0)),
    )

    out = pl.pallas_call(
        actor_kernel,
        out_shape=jax.ShapeDtypeStruct((B, Ap), jnp.bfloat16),
        grid_spec=grid_spec,
        compiler_params=pltpu.CompilerParams(
            dimension_semantics=("parallel",),             # batch steps shard across TCs (v7x)
            vmem_limit_bytes=32 * 1024 * 1024,             # explicit budget; <= 48 MiB v7x cap
        ),
        cost_estimate=cost,
    )(state_bf16, w1, vec1, w2, vec2, w3, b3)

    # Drop lane padding, restore the module's f32 interface (tiny XLA op on (B, A)).
    return out[:, :A].astype(jnp.float32)


def init_actor_params(key, state_size, action_size, hidden_sizes=(256, 256)):
    """Deterministic synthetic init (PyTorch-Linear-style uniform; LN gamma~1, beta=0).
    Weights stored bf16 (MXU fast path, half the DMA bytes); last-layer action dim is
    zero-padded to a multiple of 128 lanes; per-layer bias/LN vectors packed into (3, H)
    slabs to cut replicated-BlockSpec count."""
    h1, h2 = hidden_sizes
    a_pad = max(LANE, ((action_size + LANE - 1) // LANE) * LANE)
    ks = jax.random.split(key, 8)

    def lin(kw, kb, fan_in, fan_out):
        bound = fan_in ** -0.5
        w = jax.random.uniform(kw, (fan_in, fan_out), jnp.float32, -bound, bound)
        b = jax.random.uniform(kb, (1, fan_out), jnp.float32, -bound, bound)
        return w, b

    w1, b1 = lin(ks[0], ks[1], state_size, h1)
    w2, b2 = lin(ks[2], ks[3], h1, h2)
    w3, b3 = lin(ks[4], ks[5], h2, action_size)
    # Pad the action dim to lane width; padded columns are zero so they never leak.
    w3 = jnp.pad(w3, ((0, 0), (0, a_pad - action_size)))
    b3 = jnp.pad(b3, ((0, 0), (0, a_pad - action_size)))

    g1 = 1.0 + 0.01 * jax.random.normal(ks[6], (1, h1), jnp.float32)
    be1 = jnp.zeros((1, h1), jnp.float32)
    g2 = 1.0 + 0.01 * jax.random.normal(ks[7], (1, h2), jnp.float32)
    be2 = jnp.zeros((1, h2), jnp.float32)

    vec1 = jnp.concatenate([b1, g1, be1], axis=0)   # (3, H1): [bias; gamma; beta]
    vec2 = jnp.concatenate([b2, g2, be2], axis=0)   # (3, H2)

    return dict(
        w1=w1.astype(jnp.bfloat16), vec1=vec1,
        w2=w2.astype(jnp.bfloat16), vec2=vec2,
        w3=w3.astype(jnp.bfloat16), b3=b3,
        action_size=action_size,
    )


def actor_reference(state, p):
    """Pure-JAX f32 reference matching PyTorch semantics (bf16-stored weights upcast)."""
    w1 = p["w1"].astype(jnp.float32)
    w2 = p["w2"].astype(jnp.float32)
    w3 = p["w3"].astype(jnp.float32)
    b1, g1, be1 = p["vec1"][0:1], p["vec1"][1:2], p["vec1"][2:3]
    b2, g2, be2 = p["vec2"][0:1], p["vec2"][1:2], p["vec2"][2:3]

    h = state @ w1 + b1
    mu = h.mean(-1, keepdims=True)
    var = ((h - mu) ** 2).mean(-1, keepdims=True)
    h = (h - mu) / jnp.sqrt(var + LN_EPS) * g1 + be1
    h = jnp.maximum(h, 0.0)

    h = h @ w2 + b2
    mu = h.mean(-1, keepdims=True)
    var = ((h - mu) ** 2).mean(-1, keepdims=True)
    h = (h - mu) / jnp.sqrt(var + LN_EPS) * g2 + be2
    h = jnp.maximum(h, 0.0)

    out = jnp.tanh(h @ w3 + p["b3"])
    return out[:, :p["action_size"]]


if __name__ == "__main__":
    key = jax.random.PRNGKey(0)
    k_param, k_state = jax.random.split(key)

    B, STATE, ACTION = 16, 16, 8
    HIDDEN = (256, 256)   # PyTorch module default hidden_sizes

    params = init_actor_params(k_param, STATE, ACTION, HIDDEN)
    state = jax.random.normal(k_state, (B, STATE), jnp.float32)

    out = actor_forward(state, params)   # B=16 < 512 -> single full-batch block
    out = jax.block_until_ready(out)

    ref = actor_reference(state, params)
    assert out.shape == (B, ACTION), out.shape
    err = float(jnp.max(jnp.abs(out - ref)))
    # bf16 MXU operands + bf16 output vs the f32 reference -> loosened tolerance.
    assert err < 3e-2, f"max abs err {err}"

    print("KERNEL_OK")
</pallas_src>

<mosaic_0001>
module attributes {stable_mosaic.version = 11 : i64} {
  func.func @actor_kernel(%arg0: i32, %arg1: memref<16x16xbf16, #tpu.memory_space<vmem>>, %arg2: memref<16x256xbf16, #tpu.memory_space<vmem>>, %arg3: memref<3x256xf32, #tpu.memory_space<vmem>>, %arg4: memref<256x256xbf16, #tpu.memory_space<vmem>>, %arg5: memref<3x256xf32, #tpu.memory_space<vmem>>, %arg6: memref<256x128xbf16, #tpu.memory_space<vmem>>, %arg7: memref<1x128xf32, #tpu.memory_space<vmem>>, %arg8: memref<16x128xbf16, #tpu.memory_space<vmem>>) attributes {dimension_semantics = [#tpu.dimension_semantics<parallel>], iteration_bounds = array<i64: 1>, scalar_prefetch = 0 : i64, scratch_operands = 0 : i64, tpu.core_type = #tpu.core_type<tc>, window_params = [{transform_indices = @transform_0, window_bounds = array<i64: 16, 16>}, {pipeline_mode = #tpu.pipeline_mode<synchronous>, transform_indices = @transform_1, window_bounds = array<i64: 16, 256>}, {pipeline_mode = #tpu.pipeline_mode<synchronous>, transform_indices = @transform_2, window_bounds = array<i64: 3, 256>}, {pipeline_mode = #tpu.pipeline_mode<synchronous>, transform_indices = @transform_3, window_bounds = array<i64: 256, 256>}, {pipeline_mode = #tpu.pipeline_mode<synchronous>, transform_indices = @transform_4, window_bounds = array<i64: 3, 256>}, {pipeline_mode = #tpu.pipeline_mode<synchronous>, transform_indices = @transform_5, window_bounds = array<i64: 256, 128>}, {pipeline_mode = #tpu.pipeline_mode<synchronous>, transform_indices = @transform_6, window_bounds = array<i64: 1, 128>}, {transform_indices = @transform_7, window_bounds = array<i64: 16, 128>}]} {
    %c0 = arith.constant 0 : index
    %c0_0 = arith.constant 0 : index
    %0 = vector.load %arg1[%c0, %c0_0] : memref<16x16xbf16, #tpu.memory_space<vmem>>, vector<16x16xbf16>
    %c0_1 = arith.constant 0 : index
    %c0_2 = arith.constant 0 : index
    %1 = vector.load %arg2[%c0_1, %c0_2] : memref<16x256xbf16, #tpu.memory_space<vmem>>, vector<16x256xbf16>
    %cst = arith.constant dense<0.000000e+00> : vector<16x256xf32>
    %2 = tpu.matmul %0, %1, %cst {dimension_numbers = #tpu.dot_dimension_numbers<[1], [0], [0], [1], [0, 0, 1, 1], [], []>} : vector<16x16xbf16>, vector<16x256xbf16>, vector<16x256xf32> -> vector<16x256xf32>
    %c0_3 = arith.constant 0 : index
    %c0_4 = arith.constant 0 : index
    %3 = vector.load %arg3[%c0_3, %c0_4] : memref<3x256xf32, #tpu.memory_space<vmem>>, vector<1x256xf32>
    %4 = vector.broadcast %3 : vector<1x256xf32> to vector<16x256xf32>
    %5 = arith.addf %2, %4 : vector<16x256xf32>
    %c1 = arith.constant 1 : index
    %c0_5 = arith.constant 0 : index
    %6 = vector.load %arg3[%c1, %c0_5] : memref<3x256xf32, #tpu.memory_space<vmem>>, vector<1x256xf32>
    %c2 = arith.constant 2 : index
    %c0_6 = arith.constant 0 : index
    %7 = vector.load %arg3[%c2, %c0_6] : memref<3x256xf32, #tpu.memory_space<vmem>>, vector<1x256xf32>
    %cst_7 = arith.constant dense<0.000000e+00> : vector<16xf32>
    %8 = vector.multi_reduction <add>, %5, %cst_7 [1] : vector<16x256xf32> to vector<16xf32>
    %9 = vector.shape_cast %8 : vector<16xf32> to vector<16x1xf32>
    %cst_8 = arith.constant 2.560000e+02 : f32
    %10 = vector.broadcast %cst_8 : f32 to vector<16x1xf32>
    %11 = arith.divf %9, %10 : vector<16x1xf32>
    %12 = arith.mulf %5, %5 : vector<16x256xf32>
    %cst_9 = arith.constant dense<0.000000e+00> : vector<16xf32>
    %13 = vector.multi_reduction <add>, %12, %cst_9 [1] : vector<16x256xf32> to vector<16xf32>
    %14 = vector.shape_cast %13 : vector<16xf32> to vector<16x1xf32>
    %cst_10 = arith.constant 2.560000e+02 : f32
    %15 = vector.broadcast %cst_10 : f32 to vector<16x1xf32>
    %16 = arith.divf %14, %15 : vector<16x1xf32>
    %17 = arith.mulf %11, %11 : vector<16x1xf32>
    %18 = arith.subf %16, %17 : vector<16x1xf32>
    %cst_11 = arith.constant 0.000000e+00 : f32
    %19 = vector.broadcast %cst_11 : f32 to vector<16x1xf32>
    %20 = arith.maximumf %18, %19 : vector<16x1xf32>
    %21 = vector.broadcast %11 : vector<16x1xf32> to vector<16x256xf32>
    %22 = arith.subf %5, %21 : vector<16x256xf32>
    %cst_12 = arith.constant 9.99999974E-6 : f32
    %23 = vector.broadcast %cst_12 : f32 to vector<16x1xf32>
    %24 = arith.addf %20, %23 : vector<16x1xf32>
    %25 = math.rsqrt %24 : vector<16x1xf32>
    %26 = vector.broadcast %25 : vector<16x1xf32> to vector<16x256xf32>
    %27 = arith.mulf %22, %26 : vector<16x256xf32>
    %28 = vector.broadcast %6 : vector<1x256xf32> to vector<16x256xf32>
    %29 = arith.mulf %27, %28 : vector<16x256xf32>
    %30 = vector.broadcast %7 : vector<1x256xf32> to vector<16x256xf32>
    %31 = arith.addf %29, %30 : vector<16x256xf32>
    %cst_13 = arith.constant 0.000000e+00 : f32
    %32 = vector.broadcast %cst_13 : f32 to vector<16x256xf32>
    %33 = arith.maximumf %31, %32 : vector<16x256xf32>
    %34 = arith.truncf %33 : vector<16x256xf32> to vector<16x256xbf16>
    %c0_14 = arith.constant 0 : index
    %c0_15 = arith.constant 0 : index
    %35 = vector.load %arg4[%c0_14, %c0_15] : memref<256x256xbf16, #tpu.memory_space<vmem>>, vector<256x256xbf16>
    %cst_16 = arith.constant dense<0.000000e+00> : vector<16x256xf32>
    %36 = tpu.matmul %34, %35, %cst_16 {dimension_numbers = #tpu.dot_dimension_numbers<[1], [0], [0], [1], [0, 0, 1, 1], [], []>} : vector<16x256xbf16>, vector<256x256xbf16>, vector<16x256xf32> -> vector<16x256xf32>
    %c0_17 = arith.constant 0 : index
    %c0_18 = arith.constant 0 : index
    %37 = vector.load %arg5[%c0_17, %c0_18] : memref<3x256xf32, #tpu.memory_space<vmem>>, vector<1x256xf32>
    %38 = vector.broadcast %37 : vector<1x256xf32> to vector<16x256xf32>
    %39 = arith.addf %36, %38 : vector<16x256xf32>
    %c1_19 = arith.constant 1 : index
    %c0_20 = arith.constant 0 : index
    %40 = vector.load %arg5[%c1_19, %c0_20] : memref<3x256xf32, #tpu.memory_space<vmem>>, vector<1x256xf32>
    %c2_21 = arith.constant 2 : index
    %c0_22 = arith.constant 0 : index
    %41 = vector.load %arg5[%c2_21, %c0_22] : memref<3x256xf32, #tpu.memory_space<vmem>>, vector<1x256xf32>
    %cst_23 = arith.constant dense<0.000000e+00> : vector<16xf32>
    %42 = vector.multi_reduction <add>, %39, %cst_23 [1] : vector<16x256xf32> to vector<16xf32>
    %43 = vector.shape_cast %42 : vector<16xf32> to vector<16x1xf32>
    %cst_24 = arith.constant 2.560000e+02 : f32
    %44 = vector.broadcast %cst_24 : f32 to vector<16x1xf32>
    %45 = arith.divf %43, %44 : vector<16x1xf32>
    %46 = arith.mulf %39, %39 : vector<16x256xf32>
    %cst_25 = arith.constant dense<0.000000e+00> : vector<16xf32>
    %47 = vector.multi_reduction <add>, %46, %cst_25 [1] : vector<16x256xf32> to vector<16xf32>
    %48 = vector.shape_cast %47 : vector<16xf32> to vector<16x1xf32>
    %cst_26 = arith.constant 2.560000e+02 : f32
    %49 = vector.broadcast %cst_26 : f32 to vector<16x1xf32>
    %50 = arith.divf %48, %49 : vector<16x1xf32>
    %51 = arith.mulf %45, %45 : vector<16x1xf32>
    %52 = arith.subf %50, %51 : vector<16x1xf32>
    %cst_27 = arith.constant 0.000000e+00 : f32
    %53 = vector.broadcast %cst_27 : f32 to vector<16x1xf32>
    %54 = arith.maximumf %52, %53 : vector<16x1xf32>
    %55 = vector.broadcast %45 : vector<16x1xf32> to vector<16x256xf32>
    %56 = arith.subf %39, %55 : vector<16x256xf32>
    %cst_28 = arith.constant 9.99999974E-6 : f32
    %57 = vector.broadcast %cst_28 : f32 to vector<16x1xf32>
    %58 = arith.addf %54, %57 : vector<16x1xf32>
    %59 = math.rsqrt %58 : vector<16x1xf32>
    %60 = vector.broadcast %59 : vector<16x1xf32> to vector<16x256xf32>
    %61 = arith.mulf %56, %60 : vector<16x256xf32>
    %62 = vector.broadcast %40 : vector<1x256xf32> to vector<16x256xf32>
    %63 = arith.mulf %61, %62 : vector<16x256xf32>
    %64 = vector.broadcast %41 : vector<1x256xf32> to vector<16x256xf32>
    %65 = arith.addf %63, %64 : vector<16x256xf32>
    %cst_29 = arith.constant 0.000000e+00 : f32
    %66 = vector.broadcast %cst_29 : f32 to vector<16x256xf32>
    %67 = arith.maximumf %65, %66 : vector<16x256xf32>
    %68 = arith.truncf %67 : vector<16x256xf32> to vector<16x256xbf16>
    %c0_30 = arith.constant 0 : index
    %c0_31 = arith.constant 0 : index
    %69 = vector.load %arg6[%c0_30, %c0_31] : memref<256x128xbf16, #tpu.memory_space<vmem>>, vector<256x128xbf16>
    %cst_32 = arith.constant dense<0.000000e+00> : vector<16x128xf32>
    %70 = tpu.matmul %68, %69, %cst_32 {dimension_numbers = #tpu.dot_dimension_numbers<[1], [0], [0], [1], [0, 0, 1, 1], [], []>} : vector<16x256xbf16>, vector<256x128xbf16>, vector<16x128xf32> -> vector<16x128xf32>
    %c0_33 = arith.constant 0 : index
    %c0_34 = arith.constant 0 : index
    %71 = vector.load %arg7[%c0_33, %c0_34] : memref<1x128xf32, #tpu.memory_space<vmem>>, vector<1x128xf32>
    %72 = vector.broadcast %71 : vector<1x128xf32> to vector<16x128xf32>
    %73 = arith.addf %70, %72 : vector<16x128xf32>
    %74 = math.tanh %73 : vector<16x128xf32>
    %75 = arith.truncf %74 : vector<16x128xf32> to vector<16x128xbf16>
    %c0_35 = arith.constant 0 : index
    %c0_36 = arith.constant 0 : index
    %76 = vector.load %arg8[%c0_35, %c0_36] : memref<16x128xbf16, #tpu.memory_space<vmem>>, vector<16x128xbf16>
    tpu.vector_store %arg8[%c0_35, %c0_36], %75 {strides = array<i32>} : memref<16x128xbf16, #tpu.memory_space<vmem>>, vector<16x128xbf16>,
    return
  }
  func.func @transform_0(%arg0: i32) -> (i32, i32) {
    %c0_i32 = arith.constant 0 : i32
    %c0_i32_0 = arith.constant 0 : i32
    return %arg0, %c0_i32 : i32, i32
  }
  func.func @transform_1(%arg0: i32) -> (i32, i32) {
    %c0_i32 = arith.constant 0 : i32
    %c0_i32_0 = arith.constant 0 : i32
    %c0_i32_1 = arith.constant 0 : i32
    return %c0_i32, %c0_i32_0 : i32, i32
  }
  func.func @transform_2(%arg0: i32) -> (i32, i32) {
    %c0_i32 = arith.constant 0 : i32
    %c0_i32_0 = arith.constant 0 : i32
    %c0_i32_1 = arith.constant 0 : i32
    return %c0_i32, %c0_i32_0 : i32, i32
  }
  func.func @transform_3(%arg0: i32) -> (i32, i32) {
    %c0_i32 = arith.constant 0 : i32
    %c0_i32_0 = arith.constant 0 : i32
    %c0_i32_1 = arith.constant 0 : i32
    return %c0_i32, %c0_i32_0 : i32, i32
  }
  func.func @transform_4(%arg0: i32) -> (i32, i32) {
    %c0_i32 = arith.constant 0 : i32
    %c0_i32_0 = arith.constant 0 : i32
    %c0_i32_1 = arith.constant 0 : i32
    return %c0_i32, %c0_i32_0 : i32, i32
  }
  func.func @transform_5(%arg0: i32) -> (i32, i32) {
    %c0_i32 = arith.constant 0 : i32
    %c0_i32_0 = arith.constant 0 : i32
    %c0_i32_1 = arith.constant 0 : i32
    return %c0_i32, %c0_i32_0 : i32, i32
  }
  func.func @transform_6(%arg0: i32) -> (i32, i32) {
    %c0_i32 = arith.constant 0 : i32
    %c0_i32_0 = arith.constant 0 : i32
    %c0_i32_1 = arith.constant 0 : i32
    return %c0_i32, %c0_i32_0 : i32, i32
  }
  func.func @transform_7(%arg0: i32) -> (i32, i32) {
    %c0_i32 = arith.constant 0 : i32
    %c0_i32_0 = arith.constant 0 : i32
    return %arg0, %c0_i32 : i32, i32
  }
}

</mosaic_0001>

<llo_original>
// kernel: tpu_custom_call.1
$region0: #{tpu_custom_call.1}
  #allocation0 [shape = 'u32[]', space=smem, size = 0x4, offset = 0x4, fixed_abs, tag = 'smem constant byte address 0x4 - core index']
  #allocation1 [shape = 'u32[144,128]{1,0:T(1,128)}', space=vmem, size = 0x12000, scoped, tag = 'internal scratch']
  %s0 = inlined_call_operand.hbm [shape: bf16[16,16], index: 0, kind: input, shape index: {}]
  %s1 = inlined_call_operand.hbm [shape: bf16[16,256], index: 1, kind: input, shape index: {}]
  %s2 = inlined_call_operand.hbm [shape: f32[3,256], index: 2, kind: input, shape index: {}]
  %s3 = inlined_call_operand.hbm [shape: bf16[256,256], index: 3, kind: input, shape index: {}]
  %s4 = inlined_call_operand.vmem [shape: f32[3,256], index: 4, kind: input, shape index: {}]
  %s5 = inlined_call_operand.hbm [shape: bf16[256,128], index: 5, kind: input, shape index: {}]
  %s6 = inlined_call_operand.vmem [shape: f32[1,128], index: 6, kind: input, shape index: {}]
  %s7 = inlined_call_operand.hbm [shape: bf16[16,128], index: 7, kind: output, shape index: {}]
  %s8 = sld [smem:[#allocation0]]
  $region58: #{tpu_custom_call.1} parent=0
    _
  %s10 = ssub.s32 1, %s8
  %s11 = scalar_select 0, %s10, %s8
  $region1: #{tpu_custom_call.1} parent=0
    #allocation2 [shape = 'u8[4096]{0}', space=vmem, size = 0x1000, scoped, tag = 'input window, operand 0, single buffered']
    #allocation3 [shape = 's32[1]{0}', space=sflag, size = 0x4, scoped, tag = 'scoped memory for tpu_custom_call.1']
    #allocation4 [shape = 's32[1]{0}', space=sflag, size = 0x4, scoped, tag = 'scoped memory for tpu_custom_call.1']
    #allocation5 [shape = 'u8[8192]{0}', space=vmem, size = 0x2000, scoped, tag = 'input window, operand 1, single buffered']
    #allocation6 [shape = 's32[1]{0}', space=sflag, size = 0x4, scoped, tag = 'scoped memory for tpu_custom_call.1']
    #allocation7 [shape = 'u8[4096]{0}', space=vmem, size = 0x1000, scoped, tag = 'input window, operand 2, single buffered']
    #allocation8 [shape = 'u8[131072]{0}', space=vmem, size = 0x20000, scoped, tag = 'input window, operand 3, single buffered']
    #allocation9 [shape = 's32[1]{0}', space=sflag, size = 0x4, scoped, tag = 'scoped memory for tpu_custom_call.1']
    #allocation10 [shape = 'u8[65536]{0}', space=vmem, size = 0x10000, scoped, tag = 'input window, operand 5, single buffered']
    #allocation11 [shape = 'u8[4096]{0}', space=vmem, size = 0x1000, scoped, tag = 'output window, operand 0, single buffered']
    %12 = vsyncpa [#allocation3], 0
    %13 = vsyncpa [#allocation6], 0
    %14 = vsyncpa [#allocation9], 0
    %15 = vsyncpa [#allocation4], 0
    // Predicated region
    $region2: #{tpu_custom_call.1} parent=1 // pred_check
      _
    $region3: #{tpu_custom_call.1} parent=1 // pred_check_branch
      %17 = sbr.rel (0) target = $region5
    $region4: #{tpu_custom_call.1} parent=1 // pred_region
      %s19 = ssub.s32 128, 128
      %20 = vsyncadd [#allocation3], %s19
      %s21 = sshll.u32 [#allocation2], 4
      %s22 = int_to_ptr.vmem [resolvable:$true] %s21
      %27 = dma.hbm_to_vmem [thread:$0]  %s0, 128, %s22, [#allocation3], 64, 64, 4
    $region5: #{tpu_custom_call.1} parent=1 // pred_fallthru
      _
    // Predicated region
    $region6: #{tpu_custom_call.1} parent=1 // pred_check
      _
    $region7: #{tpu_custom_call.1} parent=1 // pred_check_branch
      %29 = sbr.rel (0) target = $region9
    $region8: #{tpu_custom_call.1} parent=1 // pred_region
      %s31 = ssub.s32 256, 256
      %32 = vsyncadd [#allocation6], %s31
      %s33 = sshll.u32 [#allocation5], 4
      %s34 = int_to_ptr.vmem [resolvable:$true] %s33
      %39 = dma.hbm_to_vmem [thread:$0]  %s1, 256, %s34, [#allocation6], 128, 128, 8
    $region9: #{tpu_custom_call.1} parent=1 // pred_fallthru
      _
    // Predicated region
    $region10: #{tpu_custom_call.1} parent=1 // pred_check
      _
    $region11: #{tpu_custom_call.1} parent=1 // pred_check_branch
      %41 = sbr.rel (0) target = $region13
    $region12: #{tpu_custom_call.1} parent=1 // pred_region
      %s43 = ssub.s32 128, 128
      %44 = vsyncadd [#allocation6], %s43
      %s46 = sshll.u32 [#allocation7], 4
      %s47 = int_to_ptr.vmem [resolvable:$true] %s46
      %49 = dma.hbm_to_vmem [thread:$0]  %s2, 128, %s47, [#allocation6]
    $region13: #{tpu_custom_call.1} parent=1 // pred_fallthru
      _
    // Predicated region
    $region14: #{tpu_custom_call.1} parent=1 // pred_check
      _
    $region15: #{tpu_custom_call.1} parent=1 // pred_check_branch
      %51 = sbr.rel (0) target = $region17
    $region16: #{tpu_custom_call.1} parent=1 // pred_region
      %s53 = ssub.s32 4096, 4096
      %54 = vsyncadd [#allocation9], %s53
      %s55 = sshll.u32 [#allocation8], 4
      %s56 = int_to_ptr.vmem [resolvable:$true] %s55
      %61 = dma.hbm_to_vmem [thread:$0]  %s3, 4096, %s56, [#allocation9], 128, 128, 8
    $region17: #{tpu_custom_call.1} parent=1 // pred_fallthru
      _
    // Predicated region
    $region18: #{tpu_custom_call.1} parent=1 // pred_check
      _
    $region19: #{tpu_custom_call.1} parent=1 // pred_check_branch
      %63 = sbr.rel (0) target = $region21
    $region20: #{tpu_custom_call.1} parent=1 // pred_region
      _
    $region21: #{tpu_custom_call.1} parent=1 // pred_fallthru
      _
    // Predicated region
    $region22: #{tpu_custom_call.1} parent=1 // pred_check
      _
    $region23: #{tpu_custom_call.1} parent=1 // pred_check_branch
      %65 = sbr.rel (0) target = $region25
    $region24: #{tpu_custom_call.1} parent=1 // pred_region
      %s67 = ssub.s32 2048, 2048
      %68 = vsyncadd [#allocation9], %s67
      %s69 = sshll.u32 [#allocation10], 4
      %s70 = int_to_ptr.vmem [resolvable:$true] %s69
      %75 = dma.hbm_to_vmem [thread:$0]  %s5, 2048, %s70, [#allocation9], 64, 64, 4
    $region25: #{tpu_custom_call.1} parent=1 // pred_fallthru
      _
    // Predicated region
    $region26: #{tpu_custom_call.1} parent=1 // pred_check
      _
    $region27: #{tpu_custom_call.1} parent=1 // pred_check_branch
      %77 = sbr.rel (0) target = $region29
    $region28: #{tpu_custom_call.1} parent=1 // pred_region
      _
    $region29: #{tpu_custom_call.1} parent=1 // pred_fallthru
      _
    // Predicated region
    $region30: #{tpu_custom_call.1} parent=1 // pred_check
      _
    $region31: #{tpu_custom_call.1} parent=1 // pred_check_branch
      %79 = sbr.rel (0) target = $region33
    $region32: #{tpu_custom_call.1} parent=1 // pred_region
      %80 = dma.done [#allocation3], 128
    $region33: #{tpu_custom_call.1} parent=1 // pred_fallthru
      _
    // Predicated region
    $region34: #{tpu_custom_call.1} parent=1 // pred_check
      _
    $region35: #{tpu_custom_call.1} parent=1 // pred_check_branch
      %82 = sbr.rel (0) target = $region37
    $region36: #{tpu_custom_call.1} parent=1 // pred_region
      %83 = dma.done [#allocation6], 256
    $region37: #{tpu_custom_call.1} parent=1 // pred_fallthru
      _
    // Predicated region
    $region38: #{tpu_custom_call.1} parent=1 // pred_check
      _
    $region39: #{tpu_custom_call.1} parent=1 // pred_check_branch
      %85 = sbr.rel (0) target = $region41
    $region40: #{tpu_custom_call.1} parent=1 // pred_region
      %86 = dma.done [#allocation6], 128
    $region41: #{tpu_custom_call.1} parent=1 // pred_fallthru
      _
    // Predicated region
    $region42: #{tpu_custom_call.1} parent=1 // pred_check
      _
    $region43: #{tpu_custom_call.1} parent=1 // pred_check_branch
      %88 = sbr.rel (0) target = $region45
    $region44: #{tpu_custom_call.1} parent=1 // pred_region
      %89 = dma.done [#allocation9], 4096
    $region45: #{tpu_custom_call.1} parent=1 // pred_fallthru
      _
    // Predicated region
    $region46: #{tpu_custom_call.1} parent=1 // pred_check
      _
    $region47: #{tpu_custom_call.1} parent=1 // pred_check_branch
      %91 = sbr.rel (0) target = $region49
    $region48: #{tpu_custom_call.1} parent=1 // pred_region
      %92 = dma.done [#allocation9], 2048
    $region49: #{tpu_custom_call.1} parent=1 // pred_fallthru
      _
    %v94 = vld [vmem:[#allocation2] sm:$0xf]
    %v95 = vld [vmem:[#allocation2 + $0x4] sm:$0xf]
    %v96 = vld [vmem:[#allocation5] sm:$0xff]
    %v97 = vld [vmem:[#allocation5 + $0x8] sm:$0xff]
    %v98 = vld [vmem:[#allocation7] ss:$4 sm:$0x3]
    %v100 = vlaneseq
    %v101 = vshrl.u32 %v100, 7
    %v102 = vsub.s32 0, %v101
    %v103 = vrot.slane %v98, %v102
    %v104 = vlaneseq
    %v105 = vshrl.u32 %v104, 7
    %v106 = vsub.s32 1, %v105
    %v107 = vrot.slane %v98, %v106
    %v112 = vunpack.c.l.b16 %v94
    %v113 = vunpack.c.l.b16 %v95
    %v114 = vpack.c.b16 %v113, %v112
    %v117 = vunpack.c.l.b16 %v96
    %v118 = vunpack.c.h.b16 %v96
    %v119 = vunpack.c.l.b16 %v97
    %v120 = vunpack.c.h.b16 %v97
    %v121 = vpack.c.b16 %v119, %v117
    %v122 = vpack.c.b16 %v120, %v118
    %vm125 = vcmask 130048
    %v127 = vsel %vm125, %v114, 0
    %129 = vmatprep.subr.bf16.mxu0 %v122
    %130 = vmatpush1.bf16.msra.mxu0 %v121
    %131 = vmatprep.subr.bf16.mxu0 0
    %132 = vmatpush1.bf16.msra.mxu0 0
    %133 = vmatprep.subr.bf16.mxu0 0
    %134 = vmatpush1.bf16.msra.mxu0 0
    %135 = vmatprep.subr.bf16.mxu0 0
    %136 = vmatpush1.bf16.msra.mxu0 0
    %137 = vmatprep.subr.bf16.mxu0 0
    %138 = vmatpush1.bf16.msra.mxu0 0
    %139 = vmatprep.subr.bf16.mxu0 0
    %140 = vmatpush1.bf16.msra.mxu0 0
    %141 = vmatprep.subr.bf16.mxu0 0
    %142 = vmatpush1.bf16.msra.mxu0 0
    %143 = vmatprep.subr.bf16.mxu0 0
    %144 = vmatpush1.bf16.msra.mxu0 0
    %145 = vmatprep.subr.bf16.mxu0 0
    %146 = vmatpush1.bf16.msra.mxu0 0
    %147 = vmatprep.subr.bf16.mxu0 0
    %148 = vmatpush1.bf16.msra.mxu0 0
    %149 = vmatprep.subr.bf16.mxu0 0
    %150 = vmatpush1.bf16.msra.mxu0 0
    %151 = vmatprep.subr.bf16.mxu0 0
    %152 = vmatpush1.bf16.msra.mxu0 0
    %153 = vmatprep.subr.bf16.mxu0 0
    %154 = vmatpush1.bf16.msra.mxu0 0
    %155 = vmatprep.subr.bf16.mxu0 0
    %156 = vmatpush1.bf16.msra.mxu0 0
    %157 = vmatprep.subr.bf16.mxu0 0
    %158 = vmatpush1.bf16.msra.mxu0 0
    %159 = vmatprep.subr.bf16.mxu0 0
    %160 = vmatpush1.bf16.msra.mxu0 0
    %161 = vmatprep.mubr.bf16.mxu0 0
    %162 = vmatmul.mubr.bf16.gmra.mrb[0].mxu0 %v127
    %v163 = vpop.f32.mrb[0].mxu0
    %v164 = vadd.f32 %v103, %v163
    %v165 = vpop.f32.mrb[0].mxu0
    %v166 = vadd.f32 %v107, %v165
    %v167 = vpop.f32.mrb[0].mxu0
    %v168 = vadd.f32 %v103, %v167
    %v169 = vpop.f32.mrb[0].mxu0
    %v170 = vadd.f32 %v107, %v169
    %171 = vdwg.mxu0
    %s172 = scalar_lea.vmem [#allocation7], 1
    %v173 = vld [vmem:[%s172] ss:$4 sm:$0x3]
    %s174 = scalar_lea.vmem [#allocation7], 2
    %v175 = vld [vmem:[%s174] ss:$4 sm:$0x3]
    %v176 = vadd.f32 %v164, %v166
    %177 = vadd.xlane.f32.xlu0 %v176
    %v178 = vpop.xlane.xlu0 %177
    %v179 = vadd.f32 %v168, %v170
    %180 = vadd.xlane.f32.xlu0 %v179
    %v181 = vpop.xlane.xlu0 %180
    %v182 = vrcp.pop 256.0
    %v183 = vmul.f32 %v178, %v182
    %v184 = vmul.f32 %v181, %v182
    %v185 = vmul.f32 %v164, %v164
    %v186 = vmul.f32 %v166, %v166
    %v187 = vmul.f32 %v168, %v168
    %v188 = vmul.f32 %v170, %v170
    %v189 = vadd.f32 %v185, %v186
    %190 = vadd.xlane.f32.xlu0 %v189
    %v191 = vpop.xlane.xlu0 %190
    %v192 = vadd.f32 %v187, %v188
    %193 = vadd.xlane.f32.xlu0 %v192
    %v194 = vpop.xlane.xlu0 %193
    %v195 = vmul.f32 %v191, %v182
    %v196 = vmul.f32 %v194, %v182
    %v197 = vmul.f32 %v183, %v183
    %v198 = vmul.f32 %v184, %v184
    %v199 = vsub.f32 %v195, %v197
    %v200 = vsub.f32 %v196, %v198
    %v201 = vmax.f32 %v199, 0.0
    %v202 = vmax.f32 %v200, 0.0
    %v203 = vsub.f32 %v164, %v183
    %v204 = vsub.f32 %v166, %v183
    %v205 = vsub.f32 %v168, %v184
    %v206 = vsub.f32 %v170, %v184
    %v207 = vadd.f32 %v201, 1e-05
    %v208 = vadd.f32 %v202, 1e-05
    %v209 = vrsqrt.pop %v207
    %v210 = vrsqrt.pop %v208
    %v211 = vmul.f32 %v203, %v209
    %v212 = vmul.f32 %v204, %v209
    %v213 = vmul.f32 %v205, %v210
    %v214 = vmul.f32 %v206, %v210
    %v216 = vlaneseq
    %v217 = vshrl.u32 %v216, 7
    %v218 = vsub.s32 0, %v217
    %v219 = vrot.slane %v173, %v218
    %v220 = vlaneseq
    %v221 = vshrl.u32 %v220, 7
    %v222 = vsub.s32 1, %v221
    %v223 = vrot.slane %v173, %v222
    %v226 = vmul.f32 %v211, %v219
    %v227 = vmul.f32 %v212, %v223
    %v228 = vmul.f32 %v213, %v219
    %v229 = vmul.f32 %v214, %v223
    %v231 = vlaneseq
    %v232 = vshrl.u32 %v231, 7
    %v233 = vsub.s32 0, %v232
    %v234 = vrot.slane %v175, %v233
    %v235 = vlaneseq
    %v236 = vshrl.u32 %v235, 7
    %v237 = vsub.s32 1, %v236
    %v238 = vrot.slane %v175, %v237
    %v241 = vadd.f32 %v226, %v234
    %v242 = vadd.f32 %v227, %v238
    %v243 = vadd.f32 %v228, %v234
    %v244 = vadd.f32 %v229, %v238
    %v245 = vmax.f32 %v241, 0.0
    %v246 = vmax.f32 %v242, 0.0
    %v247 = vmax.f32 %v243, 0.0
    %v248 = vmax.f32 %v244, 0.0
    %v249 = vpack.c.bf16 %v247, %v245
    %v250 = vpack.c.bf16 %v248, %v246
    %v251 = vld [vmem:[#allocation8] sm:$0xff]
    %v252 = vld [vmem:[#allocation8 + $0x8] sm:$0xff]
    %v253 = vld [vmem:[#allocation8 + $0x10] sm:$0xff]
    %v254 = vld [vmem:[#allocation8 + $0x18] sm:$0xff]
    %v255 = vld [vmem:[#allocation8 + $0x20] sm:$0xff]
    %v256 = vld [vmem:[#allocation8 + $0x28] sm:$0xff]
    %v257 = vld [vmem:[#allocation8 + $0x30] sm:$0xff]
    %v258 = vld [vmem:[#allocation8 + $0x38] sm:$0xff]
    %v259 = vld [vmem:[#allocation8 + $0x40] sm:$0xff]
    %v260 = vld [vmem:[#allocation8 + $0x48] sm:$0xff]
    %v261 = vld [vmem:[#allocation8 + $0x50] sm:$0xff]
    %v262 = vld [vmem:[#allocation8 + $0x58] sm:$0xff]
    %v263 = vld [vmem:[#allocation8 + $0x60] sm:$0xff]
    %v264 = vld [vmem:[#allocation8 + $0x68] sm:$0xff]
    %v265 = vld [vmem:[#allocation8 + $0x70] sm:$0xff]
    %v266 = vld [vmem:[#allocation8 + $0x78] sm:$0xff]
    %v267 = vld [vmem:[#allocation8 + $0x80] sm:$0xff]
    %v268 = vld [vmem:[#allocation8 + $0x88] sm:$0xff]
    %v269 = vld [vmem:[#allocation8 + $0x90] sm:$0xff]
    %v270 = vld [vmem:[#allocation8 + $0x98] sm:$0xff]
    %v271 = vld [vmem:[#allocation8 + $0xa0] sm:$0xff]
    %v272 = vld [vmem:[#allocation8 + $0xa8] sm:$0xff]
    %v273 = vld [vmem:[#allocation8 + $0xb0] sm:$0xff]
    %v274 = vld [vmem:[#allocation8 + $0xb8] sm:$0xff]
    %v275 = vld [vmem:[#allocation8 + $0xc0] sm:$0xff]
    %v276 = vld [vmem:[#allocation8 + $0xc8] sm:$0xff]
    %v277 = vld [vmem:[#allocation8 + $0xd0] sm:$0xff]
    %v278 = vld [vmem:[#allocation8 + $0xd8] sm:$0xff]
    %v279 = vld [vmem:[#allocation8 + $0xe0] sm:$0xff]
    %v280 = vld [vmem:[#allocation8 + $0xe8] sm:$0xff]
    %v281 = vld [vmem:[#allocation8 + $0xf0] sm:$0xff]
    %v282 = vld [vmem:[#allocation8 + $0xf8] sm:$0xff]
    %v283 = vld [vmem:[%s4] ss:$4 sm:$0x3]
    %v285 = vlaneseq
    %v286 = vshrl.u32 %v285, 7
    %v287 = vsub.s32 0, %v286
    %v288 = vrot.slane %v283, %v287
    %v289 = vlaneseq
    %v290 = vshrl.u32 %v289, 7
    %v291 = vsub.s32 1, %v290
    %v292 = vrot.slane %v283, %v291
    %v327 = vunpack.c.l.b16 %v251
    %v328 = vunpack.c.h.b16 %v251
    %v329 = vunpack.c.l.b16 %v252
    %v330 = vunpack.c.h.b16 %v252
    %v331 = vunpack.c.l.b16 %v253
    %v332 = vunpack.c.h.b16 %v253
    %v333 = vunpack.c.l.b16 %v254
    %v334 = vunpack.c.h.b16 %v254
    %v335 = vunpack.c.l.b16 %v255
    %v336 = vunpack.c.h.b16 %v255
    %v337 = vunpack.c.l.b16 %v256
    %v338 = vunpack.c.h.b16 %v256
    %v339 = vunpack.c.l.b16 %v257
    %v340 = vunpack.c.h.b16 %v257
    %v341 = vunpack.c.l.b16 %v258
    %v342 = vunpack.c.h.b16 %v258
    %v343 = vunpack.c.l.b16 %v259
    %v344 = vunpack.c.h.b16 %v259
    %v345 = vunpack.c.l.b16 %v260
    %v346 = vunpack.c.h.b16 %v260
    %v347 = vunpack.c.l.b16 %v261
    %v348 = vunpack.c.h.b16 %v261
    %v349 = vunpack.c.l.b16 %v262
    %v350 = vunpack.c.h.b16 %v262
    %v351 = vunpack.c.l.b16 %v263
    %v352 = vunpack.c.h.b16 %v263
    %v353 = vunpack.c.l.b16 %v264
    %v354 = vunpack.c.h.b16 %v264
    %v355 = vunpack.c.l.b16 %v265
    %v356 = vunpack.c.h.b16 %v265
    %v357 = vunpack.c.l.b16 %v266
    %v358 = vunpack.c.h.b16 %v266
    %v359 = vunpack.c.l.b16 %v267
    %v360 = vunpack.c.h.b16 %v267
    %v361 = vunpack.c.l.b16 %v268
    %v362 = vunpack.c.h.b16 %v268
    %v363 = vunpack.c.l.b16 %v269
    %v364 = vunpack.c.h.b16 %v269
    %v365 = vunpack.c.l.b16 %v270
    %v366 = vunpack.c.h.b16 %v270
    %v367 = vunpack.c.l.b16 %v271
    %v368 = vunpack.c.h.b16 %v271
    %v369 = vunpack.c.l.b16 %v272
    %v370 = vunpack.c.h.b16 %v272
    %v371 = vunpack.c.l.b16 %v273
    %v372 = vunpack.c.h.b16 %v273
    %v373 = vunpack.c.l.b16 %v274
    %v374 = vunpack.c.h.b16 %v274
    %v375 = vunpack.c.l.b16 %v275
    %v376 = vunpack.c.h.b16 %v275
    %v377 = vunpack.c.l.b16 %v276
    %v378 = vunpack.c.h.b16 %v276
    %v379 = vunpack.c.l.b16 %v277
    %v380 = vunpack.c.h.b16 %v277
    %v381 = vunpack.c.l.b16 %v278
    %v382 = vunpack.c.h.b16 %v278
    %v383 = vunpack.c.l.b16 %v279
    %v384 = vunpack.c.h.b16 %v279
    %v385 = vunpack.c.l.b16 %v280
    %v386 = vunpack.c.h.b16 %v280
    %v387 = vunpack.c.l.b16 %v281
    %v388 = vunpack.c.h.b16 %v281
    %v389 = vunpack.c.l.b16 %v282
    %v390 = vunpack.c.h.b16 %v282
    %v391 = vpack.c.b16 %v329, %v327
    %v392 = vpack.c.b16 %v330, %v328
    %v393 = vpack.c.b16 %v333, %v331
    %v394 = vpack.c.b16 %v334, %v332
    %v395 = vpack.c.b16 %v337, %v335
    %v396 = vpack.c.b16 %v338, %v336
    %v397 = vpack.c.b16 %v341, %v339
    %v398 = vpack.c.b16 %v342, %v340
    %v399 = vpack.c.b16 %v345, %v343
    %v400 = vpack.c.b16 %v346, %v344
    %v401 = vpack.c.b16 %v349, %v347
    %v402 = vpack.c.b16 %v350, %v348
    %v403 = vpack.c.b16 %v353, %v351
    %v404 = vpack.c.b16 %v354, %v352
    %v405 = vpack.c.b16 %v357, %v355
    %v406 = vpack.c.b16 %v358, %v356
    %v407 = vpack.c.b16 %v361, %v359
    %v408 = vpack.c.b16 %v362, %v360
    %v409 = vpack.c.b16 %v365, %v363
    %v410 = vpack.c.b16 %v366, %v364
    %v411 = vpack.c.b16 %v369, %v367
    %v412 = vpack.c.b16 %v370, %v368
    %v413 = vpack.c.b16 %v373, %v371
    %v414 = vpack.c.b16 %v374, %v372
    %v415 = vpack.c.b16 %v377, %v375
    %v416 = vpack.c.b16 %v378, %v376
    %v417 = vpack.c.b16 %v381, %v379
    %v418 = vpack.c.b16 %v382, %v380
    %v419 = vpack.c.b16 %v385, %v383
    %v420 = vpack.c.b16 %v386, %v384
    %v421 = vpack.c.b16 %v389, %v387
    %v422 = vpack.c.b16 %v390, %v388
    %455 = vmatprep.subr.bf16.mxu0 %v392
    %456 = vmatpush1.bf16.msra.mxu0 %v391
    %457 = vmatprep.subr.bf16.mxu0 %v394
    %458 = vmatpush1.bf16.msra.mxu0 %v393
    %459 = vmatprep.subr.bf16.mxu0 %v396
    %460 = vmatpush1.bf16.msra.mxu0 %v395
    %461 = vmatprep.subr.bf16.mxu0 %v398
    %462 = vmatpush1.bf16.msra.mxu0 %v397
    %463 = vmatprep.subr.bf16.mxu0 %v400
    %464 = vmatpush1.bf16.msra.mxu0 %v399
    %465 = vmatprep.subr.bf16.mxu0 %v402
    %466 = vmatpush1.bf16.msra.mxu0 %v401
    %467 = vmatprep.subr.bf16.mxu0 %v404
    %468 = vmatpush1.bf16.msra.mxu0 %v403
    %469 = vmatprep.subr.bf16.mxu0 %v406
    %470 = vmatpush1.bf16.msra.mxu0 %v405
    %471 = vmatprep.subr.bf16.mxu0 %v408
    %472 = vmatpush1.bf16.msra.mxu0 %v407
    %473 = vmatprep.subr.bf16.mxu0 %v410
    %474 = vmatpush1.bf16.msra.mxu0 %v409
    %475 = vmatprep.subr.bf16.mxu0 %v412
    %476 = vmatpush1.bf16.msra.mxu0 %v411
    %477 = vmatprep.subr.bf16.mxu0 %v414
    %478 = vmatpush1.bf16.msra.mxu0 %v413
    %479 = vmatprep.subr.bf16.mxu0 %v416
    %480 = vmatpush1.bf16.msra.mxu0 %v415
    %481 = vmatprep.subr.bf16.mxu0 %v418
    %482 = vmatpush1.bf16.msra.mxu0 %v417
    %483 = vmatprep.subr.bf16.mxu0 %v420
    %484 = vmatpush1.bf16.msra.mxu0 %v419
    %485 = vmatprep.subr.bf16.mxu0 %v422
    %486 = vmatpush1.bf16.msra.mxu0 %v421
    %487 = vmatprep.mubr.bf16.mxu0 %v250
    %488 = vmatmul.mubr.bf16.gmra.mrb[0].mxu0 %v249
    %v489 = vpop.f32.mrb[0].mxu0
    %v490 = vadd.f32 %v288, %v489
    %v491 = vpop.f32.mrb[0].mxu0
    %v492 = vadd.f32 %v292, %v491
    %v493 = vpop.f32.mrb[0].mxu0
    %v494 = vadd.f32 %v288, %v493
    %v495 = vpop.f32.mrb[0].mxu0
    %v496 = vadd.f32 %v292, %v495
    %497 = vdwg.mxu0
    %s498 = scalar_lea.vmem %s4, 1
    %v499 = vld [vmem:[%s498] ss:$4 sm:$0x3]
    %s500 = scalar_lea.vmem %s4, 2
    %v501 = vld [vmem:[%s500] ss:$4 sm:$0x3]
    %v502 = vadd.f32 %v490, %v492
    %503 = vadd.xlane.f32.xlu0 %v502
    %v504 = vpop.xlane.xlu0 %503
    %v505 = vadd.f32 %v494, %v496
    %506 = vadd.xlane.f32.xlu0 %v505
    %v507 = vpop.xlane.xlu0 %506
    %v508 = vmul.f32 %v504, %v182
    %v509 = vmul.f32 %v507, %v182
    %v510 = vmul.f32 %v490, %v490
    %v511 = vmul.f32 %v492, %v492
    %v512 = vmul.f32 %v494, %v494
    %v513 = vmul.f32 %v496, %v496
    %v514 = vadd.f32 %v510, %v511
    %515 = vadd.xlane.f32.xlu0 %v514
    %v516 = vpop.xlane.xlu0 %515
    %v517 = vadd.f32 %v512, %v513
    %518 = vadd.xlane.f32.xlu0 %v517
    %v519 = vpop.xlane.xlu0 %518
    %v520 = vmul.f32 %v516, %v182
    %v521 = vmul.f32 %v519, %v182
    %v522 = vmul.f32 %v508, %v508
    %v523 = vmul.f32 %v509, %v509
    %v524 = vsub.f32 %v520, %v522
    %v525 = vsub.f32 %v521, %v523
    %v526 = vmax.f32 %v524, 0.0
    %v527 = vmax.f32 %v525, 0.0
    %v528 = vsub.f32 %v490, %v508
    %v529 = vsub.f32 %v492, %v508
    %v530 = vsub.f32 %v494, %v509
    %v531 = vsub.f32 %v496, %v509
    %v532 = vadd.f32 %v526, 1e-05
    %v533 = vadd.f32 %v527, 1e-05
    %v534 = vrsqrt.pop %v532
    %v535 = vrsqrt.pop %v533
    %v536 = vmul.f32 %v528, %v534
    %v537 = vmul.f32 %v529, %v534
    %v538 = vmul.f32 %v530, %v535
    %v539 = vmul.f32 %v531, %v535
    %v541 = vlaneseq
    %v542 = vshrl.u32 %v541, 7
    %v543 = vsub.s32 0, %v542
    %v544 = vrot.slane %v499, %v543
    %v545 = vlaneseq
    %v546 = vshrl.u32 %v545, 7
    %v547 = vsub.s32 1, %v546
    %v548 = vrot.slane %v499, %v547
    %v551 = vmul.f32 %v536, %v544
    %v552 = vmul.f32 %v537, %v548
    %v553 = vmul.f32 %v538, %v544
    %v554 = vmul.f32 %v539, %v548
    %v556 = vlaneseq
    %v557 = vshrl.u32 %v556, 7
    %v558 = vsub.s32 0, %v557
    %v559 = vrot.slane %v501, %v558
    %v560 = vlaneseq
    %v561 = vshrl.u32 %v560, 7
    %v562 = vsub.s32 1, %v561
    %v563 = vrot.slane %v501, %v562
    %v566 = vadd.f32 %v551, %v559
    %v567 = vadd.f32 %v552, %v563
    %v568 = vadd.f32 %v553, %v559
    %v569 = vadd.f32 %v554, %v563
    %v570 = vmax.f32 %v566, 0.0
    %v571 = vmax.f32 %v567, 0.0
    %v572 = vmax.f32 %v568, 0.0
    %v573 = vmax.f32 %v569, 0.0
    %v574 = vpack.c.bf16 %v572, %v570
    %v575 = vpack.c.bf16 %v573, %v571
    %v576 = vld [vmem:[#allocation10] sm:$0xf]
    %v577 = vld [vmem:[#allocation10 + $0x4] sm:$0xf]
    %v578 = vld [vmem:[#allocation10 + $0x8] sm:$0xf]
    %v579 = vld [vmem:[#allocation10 + $0xc] sm:$0xf]
    %v580 = vld [vmem:[#allocation10 + $0x10] sm:$0xf]
    %v581 = vld [vmem:[#allocation10 + $0x14] sm:$0xf]
    %v582 = vld [vmem:[#allocation10 + $0x18] sm:$0xf]
    %v583 = vld [vmem:[#allocation10 + $0x1c] sm:$0xf]
    %v584 = vld [vmem:[#allocation10 + $0x20] sm:$0xf]
    %v585 = vld [vmem:[#allocation10 + $0x24] sm:$0xf]
    %v586 = vld [vmem:[#allocation10 + $0x28] sm:$0xf]
    %v587 = vld [vmem:[#allocation10 + $0x2c] sm:$0xf]
    %v588 = vld [vmem:[#allocation10 + $0x30] sm:$0xf]
    %v589 = vld [vmem:[#allocation10 + $0x34] sm:$0xf]
    %v590 = vld [vmem:[#allocation10 + $0x38] sm:$0xf]
    %v591 = vld [vmem:[#allocation10 + $0x3c] sm:$0xf]
    %v592 = vld [vmem:[#allocation10 + $0x40] sm:$0xf]
    %v593 = vld [vmem:[#allocation10 + $0x44] sm:$0xf]
    %v594 = vld [vmem:[#allocation10 + $0x48] sm:$0xf]
    %v595 = vld [vmem:[#allocation10 + $0x4c] sm:$0xf]
    %v596 = vld [vmem:[#allocation10 + $0x50] sm:$0xf]
    %v597 = vld [vmem:[#allocation10 + $0x54] sm:$0xf]
    %v598 = vld [vmem:[#allocation10 + $0x58] sm:$0xf]
    %v599 = vld [vmem:[#allocation10 + $0x5c] sm:$0xf]
    %v600 = vld [vmem:[#allocation10 + $0x60] sm:$0xf]
    %v601 = vld [vmem:[#allocation10 + $0x64] sm:$0xf]
    %v602 = vld [vmem:[#allocation10 + $0x68] sm:$0xf]
    %v603 = vld [vmem:[#allocation10 + $0x6c] sm:$0xf]
    %v604 = vld [vmem:[#allocation10 + $0x70] sm:$0xf]
    %v605 = vld [vmem:[#allocation10 + $0x74] sm:$0xf]
    %v606 = vld [vmem:[#allocation10 + $0x78] sm:$0xf]
    %v607 = vld [vmem:[#allocation10 + $0x7c] sm:$0xf]
    %v608 = vld [vmem:[%s6] sm:$0x1]
    %v610 = vlaneseq
    %v611 = vshrl.u32 %v610, 7
    %v612 = vsub.s32 0, %v611
    %v613 = vrot.slane %v608, %v612
    %v647 = vunpack.c.l.b16 %v576
    %v648 = vunpack.c.l.b16 %v577
    %v649 = vunpack.c.l.b16 %v578
    %v650 = vunpack.c.l.b16 %v579
    %v651 = vunpack.c.l.b16 %v580
    %v652 = vunpack.c.l.b16 %v581
    %v653 = vunpack.c.l.b16 %v582
    %v654 = vunpack.c.l.b16 %v583
    %v655 = vunpack.c.l.b16 %v584
    %v656 = vunpack.c.l.b16 %v585
    %v657 = vunpack.c.l.b16 %v586
    %v658 = vunpack.c.l.b16 %v587
    %v659 = vunpack.c.l.b16 %v588
    %v660 = vunpack.c.l.b16 %v589
    %v661 = vunpack.c.l.b16 %v590
    %v662 = vunpack.c.l.b16 %v591
    %v663 = vunpack.c.l.b16 %v592
    %v664 = vunpack.c.l.b16 %v593
    %v665 = vunpack.c.l.b16 %v594
    %v666 = vunpack.c.l.b16 %v595
    %v667 = vunpack.c.l.b16 %v596
    %v668 = vunpack.c.l.b16 %v597
    %v669 = vunpack.c.l.b16 %v598
    %v670 = vunpack.c.l.b16 %v599
    %v671 = vunpack.c.l.b16 %v600
    %v672 = vunpack.c.l.b16 %v601
    %v673 = vunpack.c.l.b16 %v602
    %v674 = vunpack.c.l.b16 %v603
    %v675 = vunpack.c.l.b16 %v604
    %v676 = vunpack.c.l.b16 %v605
    %v677 = vunpack.c.l.b16 %v606
    %v678 = vunpack.c.l.b16 %v607
    %v679 = vpack.c.b16 %v648, %v647
    %v680 = vpack.c.b16 %v650, %v649
    %v681 = vpack.c.b16 %v652, %v651
    %v682 = vpack.c.b16 %v654, %v653
    %v683 = vpack.c.b16 %v656, %v655
    %v684 = vpack.c.b16 %v658, %v657
    %v685 = vpack.c.b16 %v660, %v659
    %v686 = vpack.c.b16 %v662, %v661
    %v687 = vpack.c.b16 %v664, %v663
    %v688 = vpack.c.b16 %v666, %v665
    %v689 = vpack.c.b16 %v668, %v667
    %v690 = vpack.c.b16 %v670, %v669
    %v691 = vpack.c.b16 %v672, %v671
    %v692 = vpack.c.b16 %v674, %v673
    %v693 = vpack.c.b16 %v676, %v675
    %v694 = vpack.c.b16 %v678, %v677
    %711 = vmatprep.subr.bf16.mxu0 0
    %712 = vmatpush1.bf16.msra.mxu0 %v679
    %713 = vmatprep.subr.bf16.mxu0 0
    %714 = vmatpush1.bf16.msra.mxu0 %v680
    %715 = vmatprep.subr.bf16.mxu0 0
    %716 = vmatpush1.bf16.msra.mxu0 %v681
    %717 = vmatprep.subr.bf16.mxu0 0
    %718 = vmatpush1.bf16.msra.mxu0 %v682
    %719 = vmatprep.subr.bf16.mxu0 0
    %720 = vmatpush1.bf16.msra.mxu0 %v683
    %721 = vmatprep.subr.bf16.mxu0 0
    %722 = vmatpush1.bf16.msra.mxu0 %v684
    %723 = vmatprep.subr.bf16.mxu0 0
    %724 = vmatpush1.bf16.msra.mxu0 %v685
    %725 = vmatprep.subr.bf16.mxu0 0
    %726 = vmatpush1.bf16.msra.mxu0 %v686
    %727 = vmatprep.subr.bf16.mxu0 0
    %728 = vmatpush1.bf16.msra.mxu0 %v687
    %729 = vmatprep.subr.bf16.mxu0 0
    %730 = vmatpush1.bf16.msra.mxu0 %v688
    %731 = vmatprep.subr.bf16.mxu0 0
    %732 = vmatpush1.bf16.msra.mxu0 %v689
    %733 = vmatprep.subr.bf16.mxu0 0
    %734 = vmatpush1.bf16.msra.mxu0 %v690
    %735 = vmatprep.subr.bf16.mxu0 0
    %736 = vmatpush1.bf16.msra.mxu0 %v691
    %737 = vmatprep.subr.bf16.mxu0 0
    %738 = vmatpush1.bf16.msra.mxu0 %v692
    %739 = vmatprep.subr.bf16.mxu0 0
    %740 = vmatpush1.bf16.msra.mxu0 %v693
    %741 = vmatprep.subr.bf16.mxu0 0
    %742 = vmatpush1.bf16.msra.mxu0 %v694
    %743 = vmatprep.mubr.bf16.mxu0 %v575
    %744 = vmatmul.mubr.bf16.gmra.mrb[0].mxu0 %v574
    %v745 = vpop.f32.mrb[0].mxu0
    %v746 = vadd.f32 %v613, %v745
    %v747 = vpop.f32.mrb[0].mxu0
    %v748 = vpop.f32.mrb[0].mxu0
    %v749 = vadd.f32 %v613, %v748
    %v750 = vpop.f32.mrb[0].mxu0
    %751 = vdwg.mxu0
    %v752 = vtanh.pop %v746
    %v753 = vtanh.pop %v749
    %v754 = vpack.c.bf16 %v753, %v752
    %v756 = vunpack.c.l.b16 %v754
    %v757 = vunpack.c.h.b16 %v754
    %v758 = vpack.c.b16 %v756, %v756
    %v759 = vpack.c.b16 %v757, %v757
    %762 = vst [vmem:[#allocation11] sm:$0xf] %v758
    %763 = vst [vmem:[#allocation11 + $0x4] sm:$0xf] %v759
    // Predicated region
    $region50: #{tpu_custom_call.1} parent=1 // pred_check
      _
    $region51: #{tpu_custom_call.1} parent=1 // pred_check_branch
      %765 = sbr.rel (0) target = $region53
    $region52: #{tpu_custom_call.1} parent=1 // pred_region
      %s767 = ssub.s32 128, 128
      %768 = vsyncadd [#allocation4], %s767
      %s769 = sshll.u32 [#allocation11], 4
      %s770 = int_to_ptr.vmem [resolvable:$true] %s769
      %775 = dma.vmem_to_hbm [thread:$0]  %s770, 128, %s7, [#allocation4], 64, 64, 4
    $region53: #{tpu_custom_call.1} parent=1 // pred_fallthru
      _
    // Predicated region
    $region54: #{tpu_custom_call.1} parent=1 // pred_check
      _
    $region55: #{tpu_custom_call.1} parent=1 // pred_check_branch
      %777 = sbr.rel (0) target = $region57
    $region56: #{tpu_custom_call.1} parent=1 // pred_region
      %778 = dma.done [#allocation4], 128
    $region57: #{tpu_custom_call.1} parent=1 // pred_fallthru
      _
    %779 = vsyncpa [#allocation3], 1
    %780 = vsyncpa [#allocation6], 1
    %781 = vsyncpa [#allocation9], 1
    %782 = vsyncpa [#allocation4], 1

</llo_original>
